<compile_context>
chip_gen: v5e
topology: v5e:2x2
jax: 0.10.0
libtpu: 0.0.40
codegen_flags: <defaults>
</compile_context>

<pallas_src>
import math
from functools import partial

import jax
import jax.numpy as jnp
from jax.experimental import pallas as pl
from jax.experimental.pallas import tpu as pltpu


def _round_up(x, m):
    return ((x + m - 1) // m) * m


def _sublane_grain(dtype):
    # f32 -> 8, bf16 -> 16, int8/fp8 -> 32 (packed sublanes).
    return max(8, 32 // jnp.dtype(dtype).itemsize)


def _pick_tile(padded_dim, grain, max_tile):
    """Largest `grain`-aligned tile <= max_tile that exactly divides padded_dim."""
    t = min(max_tile, padded_dim)
    t = max((t // grain) * grain, grain)
    while padded_dim % t != 0:
        t -= grain
    return t


def _matmul_kernel(x_ref, wt_ref, o_ref, acc_ref):
    # x_ref: (tm, tk)  wt_ref: (tk, tn)  o_ref: (tm, tn)  acc_ref: (tm, tn) f32
    @pl.when(pl.program_id(2) == 0)
    def _():
        acc_ref[...] = jnp.zeros_like(acc_ref)

    acc_ref[...] += jnp.dot(
        x_ref[...], wt_ref[...], preferred_element_type=jnp.float32
    )

    @pl.when(pl.program_id(2) == pl.num_programs(2) - 1)
    def _():
        o_ref[...] = acc_ref[...].astype(o_ref.dtype)


def prepare_weight(weight, compute_dtype=jnp.float32):
    """One-time weight prep (hoisted out of the per-call forward).

    (out, in) -> transpose to (K, N), cast to the compute dtype, zero-pad both
    dims to 128 granularity.  Store/cache the result with the parameters so the
    forward never re-reads + re-writes W in HBM before the kernel streams it.
    """
    out_size, in_size = weight.shape
    k_pad = _round_up(in_size, 128)
    n_pad = _round_up(out_size, 128)
    wt = weight.T.astype(compute_dtype)
    if (k_pad, n_pad) != (in_size, out_size):
        wt = jnp.pad(wt, ((0, k_pad - in_size), (0, n_pad - out_size)))
    return wt


@partial(
    jax.jit,
    static_argnames=(
        "out_size", "compute_dtype", "max_tm", "max_tn", "max_tk", "w_buffers"
    ),
)
def slpnet_forward(
    x,
    wt_prepared,
    *,
    out_size,
    compute_dtype=jnp.float32,
    max_tm=512,
    max_tn=512,
    max_tk=1024,
    w_buffers=2,
):
    """Forward pass of SLPNet: y = x @ W.T, with W already prepared as (K_pad, N_pad)."""
    batch, in_size = x.shape
    k_pad, n_pad = wt_prepared.shape
    assert k_pad == _round_up(in_size, 128)
    assert n_pad >= out_size
    assert wt_prepared.dtype == jnp.dtype(compute_dtype)

    out_dtype = x.dtype
    sub = _sublane_grain(compute_dtype)
    m_pad = _round_up(batch, sub)

    # Per-call x prep only (cast + pad); fuses under jit.
    x = x.astype(compute_dtype)
    if (m_pad, k_pad) != (batch, in_size):
        x = jnp.pad(x, ((0, m_pad - batch), (0, k_pad - in_size)))

    tm = _pick_tile(m_pad, sub, max_tm)
    tk = _pick_tile(k_pad, 128, max_tk)
    tn = _pick_tile(n_pad, 128, max_tn)

    # v7x megacore: keep >=2 parallel (M, N) blocks when possible so the second
    # TensorCore is not idle in the small-batch / GEMV regime.
    if (m_pad // tm) * (n_pad // tn) < 2 and n_pad >= 256:
        tn = _pick_tile(n_pad, 128, n_pad // 2)

    # Re-derive the VMEM budget per generation (v7x has only 64 MiB/TC).
    in_bytes = jnp.dtype(compute_dtype).itemsize
    out_bytes = jnp.dtype(out_dtype).itemsize
    try:
        vmem_cap = int(pltpu.get_tpu_info().vmem_capacity_bytes)
    except Exception:
        vmem_cap = 64 * 1024 * 1024  # conservative fallback (v7x-sized)
    budget = min(int(0.7 * vmem_cap), 100 * 1024 * 1024)

    def footprint(tm_, tn_, tk_):
        return (
            2 * tm_ * tk_ * in_bytes                 # double-buffered x tiles
            + max(w_buffers, 2) * tk_ * tn_ * in_bytes  # buffered W tiles
            + 2 * tm_ * tn_ * out_bytes              # double-buffered output tile
            + tm_ * tn_ * 4                          # f32 accumulator
        )

    while footprint(tm, tn, tk) > budget:
        if tk > 128:
            tk = _pick_tile(k_pad, 128, tk // 2)
        elif tn > 128:
            tn = _pick_tile(n_pad, 128, tn // 2)
        elif tm > sub:
            tm = _pick_tile(m_pad, sub, tm // 2)
        else:
            break

    grid = (m_pad // tm, n_pad // tn, k_pad // tk)

    # Count tiling re-reads: x is re-streamed per N block, W per M block.
    bytes_accessed = (
        m_pad * k_pad * in_bytes * (n_pad // tn)
        + k_pad * n_pad * in_bytes * (m_pad // tm)
        + m_pad * n_pad * out_bytes
    )

    w_spec_kwargs = {}
    if w_buffers != 2:  # deeper weight pipelining; sweep on real shapes
        w_spec_kwargs["pipeline_mode"] = pl.Buffered(w_buffers)

    out_padded = pl.pallas_call(
        _matmul_kernel,
        out_shape=jax.ShapeDtypeStruct((m_pad, n_pad), out_dtype),
        grid_spec=pltpu.PrefetchScalarGridSpec(
            num_scalar_prefetch=0,
            grid=grid,
            in_specs=[
                pl.BlockSpec((tm, tk), lambda i, j, k: (i, k)),
                pl.BlockSpec((tk, tn), lambda i, j, k: (k, j), **w_spec_kwargs),
            ],
            out_specs=pl.BlockSpec((tm, tn), lambda i, j, k: (i, j)),
            scratch_shapes=[pltpu.VMEM((tm, tn), jnp.float32)],
        ),
        compiler_params=pltpu.CompilerParams(
            dimension_semantics=("parallel", "parallel", "arbitrary"),
            vmem_limit_bytes=budget,
        ),
        cost_estimate=pl.CostEstimate(
            flops=2 * m_pad * n_pad * k_pad,
            transcendentals=0,
            bytes_accessed=bytes_accessed,
        ),
    )(x, wt_prepared)

    # Strip padding back to the logical output shape.
    return out_padded[:batch, :out_size]


def xavier_normal(key, out_size, in_size, gain=1.0, dtype=jnp.float32):
    # Matches torch.nn.init.xavier_normal_ for an (out, in) weight matrix.
    std = gain * math.sqrt(2.0 / float(in_size + out_size))
    return std * jax.random.normal(key, (out_size, in_size), dtype=dtype)


class SLPNet:
    """Pallas/JAX equivalent of the PyTorch SLPNet (bias-free Linear, Xavier init)."""

    def __init__(self, input_size, output_size, *, key, compute_dtype=jnp.float32):
        self.input_size = input_size
        self.output_size = output_size
        self.compute_dtype = compute_dtype
        self.weight = xavier_normal(key, output_size, input_size)   # (out, in) master
        # One-time hoisted weight prep (transpose + cast + pad), cached on the module.
        self.wt_prepared = prepare_weight(self.weight, compute_dtype)

    def __call__(self, x):
        return slpnet_forward(
            x,
            self.wt_prepared,
            out_size=self.output_size,
            compute_dtype=self.compute_dtype,
        )


if __name__ == "__main__":
    key = jax.random.PRNGKey(0)
    k_w, k_x = jax.random.split(key)

    batch = 8
    input_size = 32
    output_size = 16

    net = SLPNet(input_size, output_size, key=k_w, compute_dtype=jnp.float32)
    x = jax.random.normal(k_x, (batch, input_size), dtype=jnp.float32)
    y_ref = x @ net.weight.T

    # f32 compute path (tight tolerance).
    y32 = jax.block_until_ready(net(x))
    assert y32.shape == (batch, output_size)
    assert jnp.allclose(y32, y_ref, atol=1e-5, rtol=1e-5)

    # bf16 compute path (MXU-native on v6e/v7x; f32 accumulator; looser tolerance).
    wt_bf16 = prepare_weight(net.weight, jnp.bfloat16)
    y16 = jax.block_until_ready(
        slpnet_forward(
            x, wt_bf16, out_size=output_size, compute_dtype=jnp.bfloat16
        )
    )
    assert y16.shape == (batch, output_size)
    assert jnp.allclose(y16, y_ref, atol=5e-2, rtol=5e-2)

    print("KERNEL_OK")
</pallas_src>

<mosaic_0001>
module attributes {stable_mosaic.version = 11 : i64} {
  func.func @_matmul_kernel(%arg0: i32, %arg1: i32, %arg2: i32, %arg3: memref<8x128xf32, #tpu.memory_space<vmem>>, %arg4: memref<128x128xf32, #tpu.memory_space<vmem>>, %arg5: memref<8x128xf32, #tpu.memory_space<vmem>>, %arg6: memref<8x128xf32, #tpu.memory_space<vmem>>) attributes {dimension_semantics = [#tpu.dimension_semantics<parallel>, #tpu.dimension_semantics<parallel>, #tpu.dimension_semantics<arbitrary>], iteration_bounds = array<i64: 1, 1, 1>, scalar_prefetch = 0 : i64, scratch_operands = 1 : i64, tpu.core_type = #tpu.core_type<tc>, window_params = [{transform_indices = @transform_0, window_bounds = array<i64: 8, 128>}, {transform_indices = @transform_1, window_bounds = array<i64: 128, 128>}, {transform_indices = @transform_2, window_bounds = array<i64: 8, 128>}]} {
    %c0_i32 = arith.constant 0 : i32
    %0 = arith.cmpi eq, %arg2, %c0_i32 : i32
    %1 = arith.extui %0 : i1 to i32
    %c0_i32_0 = arith.constant 0 : i32
    %2 = arith.cmpi ne, %1, %c0_i32_0 : i32
    scf.if %2 {
      %cst_10 = arith.constant 0.000000e+00 : f32
      %12 = vector.broadcast %cst_10 : f32 to vector<8x128xf32>
      %c0_11 = arith.constant 0 : index
      %c0_12 = arith.constant 0 : index
      %13 = vector.load %arg6[%c0_11, %c0_12] : memref<8x128xf32, #tpu.memory_space<vmem>>, vector<8x128xf32>
      tpu.vector_store %arg6[%c0_11, %c0_12], %12 {strides = array<i32>} : memref<8x128xf32, #tpu.memory_space<vmem>>, vector<8x128xf32>,
    } else {
    }
    %c0 = arith.constant 0 : index
    %c0_1 = arith.constant 0 : index
    %3 = vector.load %arg6[%c0, %c0_1] : memref<8x128xf32, #tpu.memory_space<vmem>>, vector<8x128xf32>
    %c0_2 = arith.constant 0 : index
    %c0_3 = arith.constant 0 : index
    %4 = vector.load %arg3[%c0_2, %c0_3] : memref<8x128xf32, #tpu.memory_space<vmem>>, vector<8x128xf32>
    %c0_4 = arith.constant 0 : index
    %c0_5 = arith.constant 0 : index
    %5 = vector.load %arg4[%c0_4, %c0_5] : memref<128x128xf32, #tpu.memory_space<vmem>>, vector<128x128xf32>
    %cst = arith.constant dense<0.000000e+00> : vector<8x128xf32>
    %6 = tpu.matmul %4, %5, %cst {dimension_numbers = #tpu.dot_dimension_numbers<[1], [0], [0], [1], [0, 0, 1, 1], [], []>} : vector<8x128xf32>, vector<128x128xf32>, vector<8x128xf32> -> vector<8x128xf32>
    %7 = arith.addf %3, %6 : vector<8x128xf32>
    %c0_6 = arith.constant 0 : index
    %c0_7 = arith.constant 0 : index
    %8 = vector.load %arg6[%c0_6, %c0_7] : memref<8x128xf32, #tpu.memory_space<vmem>>, vector<8x128xf32>
    tpu.vector_store %arg6[%c0_6, %c0_7], %7 {strides = array<i32>} : memref<8x128xf32, #tpu.memory_space<vmem>>, vector<8x128xf32>,
    %c0_i32_8 = arith.constant 0 : i32
    %9 = arith.cmpi eq, %arg2, %c0_i32_8 : i32
    %10 = arith.extui %9 : i1 to i32
    %c0_i32_9 = arith.constant 0 : i32
    %11 = arith.cmpi ne, %10, %c0_i32_9 : i32
    scf.if %11 {
      %c0_10 = arith.constant 0 : index
      %c0_11 = arith.constant 0 : index
      %12 = vector.load %arg6[%c0_10, %c0_11] : memref<8x128xf32, #tpu.memory_space<vmem>>, vector<8x128xf32>
      %c0_12 = arith.constant 0 : index
      %c0_13 = arith.constant 0 : index
      %13 = vector.load %arg5[%c0_12, %c0_13] : memref<8x128xf32, #tpu.memory_space<vmem>>, vector<8x128xf32>
      tpu.vector_store %arg5[%c0_12, %c0_13], %12 {strides = array<i32>} : memref<8x128xf32, #tpu.memory_space<vmem>>, vector<8x128xf32>,
    } else {
    }
    return
  }
  func.func @transform_0(%arg0: i32, %arg1: i32, %arg2: i32) -> (i32, i32) {
    %c0_i32 = arith.constant 0 : i32
    return %arg0, %arg2 : i32, i32
  }
  func.func @transform_1(%arg0: i32, %arg1: i32, %arg2: i32) -> (i32, i32) {
    %c0_i32 = arith.constant 0 : i32
    return %arg2, %arg1 : i32, i32
  }
  func.func @transform_2(%arg0: i32, %arg1: i32, %arg2: i32) -> (i32, i32) {
    %c0_i32 = arith.constant 0 : i32
    return %arg0, %arg1 : i32, i32
  }
}

</mosaic_0001>

<llo_original>
// kernel: slpnet_forward.1
$region0: #{slpnet_forward.1}
  #allocation0 [shape = 'u32[]', space=smem, size = 0x4, offset = 0x4, fixed_abs, tag = 'smem constant byte address 0x4 - core index']
  #allocation1 [shape = 'u32[72,128]{1,0:T(1,128)}', space=vmem, size = 0x9000, scoped, tag = 'internal scratch']
  #allocation2 [shape = 'f32[8,128]{1,0:T(8,128)}', space=vmem, size = 0x1000, scoped, tag = 'scratch operand']
  %s0 = inlined_call_operand.vmem [shape: f32[8,128], index: 0, kind: input, shape index: {}]
  %s1 = inlined_call_operand.hbm [shape: f32[128,128], index: 1, kind: input, shape index: {}]
  %s2 = inlined_call_operand.hbm [shape: f32[8,128], index: 2, kind: output, shape index: {}]
  %s3 = sld [smem:[#allocation0]]
  $region30: #{slpnet_forward.1} parent=0
    _
  %s5 = ssub.s32 1, %s3
  %s6 = scalar_select 0, %s5, %s3
  $region1: #{slpnet_forward.1} parent=0
    #allocation3 [shape = 'u8[65536]{0}', space=vmem, size = 0x10000, scoped, tag = 'input window, operand 1, single buffered']
    #allocation4 [shape = 's32[1]{0}', space=sflag, size = 0x4, scoped, tag = 'scoped memory for slpnet_forward.1']
    #allocation5 [shape = 's32[1]{0}', space=sflag, size = 0x4, scoped, tag = 'scoped memory for slpnet_forward.1']
    #allocation6 [shape = 'u8[4096]{0}', space=vmem, size = 0x1000, scoped, tag = 'output window, operand 0, single buffered']
    %7 = vsyncpa [#allocation4], 0
    %8 = vsyncpa [#allocation5], 0
    // Predicated region
    $region2: #{slpnet_forward.1} parent=1 // pred_check
      _
    $region3: #{slpnet_forward.1} parent=1 // pred_check_branch
      %10 = sbr.rel (0) target = $region5
    $region4: #{slpnet_forward.1} parent=1 // pred_region
      _
    $region5: #{slpnet_forward.1} parent=1 // pred_fallthru
      _
    // Predicated region
    $region6: #{slpnet_forward.1} parent=1 // pred_check
      _
    $region7: #{slpnet_forward.1} parent=1 // pred_check_branch
      %12 = sbr.rel (0) target = $region9
    $region8: #{slpnet_forward.1} parent=1 // pred_region
      %14 = vsyncadd [#allocation4], 0
      %s15 = sshll.u32 %s1, 4
      %s16 = int_to_ptr.hbm [resolvable:$true] %s15
      %s17 = sshll.u32 [#allocation3], 4
      %s18 = int_to_ptr.vmem [resolvable:$true] %s17
      %23 = dma.hbm_to_vmem [thread:$0]  %s16, 2048, %s18, [#allocation4], 128, 128, 8
    $region9: #{slpnet_forward.1} parent=1 // pred_fallthru
      _
    // Predicated region
    $region10: #{slpnet_forward.1} parent=1 // pred_check
      _
    $region11: #{slpnet_forward.1} parent=1 // pred_check_branch
      %25 = sbr.rel (0) target = $region13
    $region12: #{slpnet_forward.1} parent=1 // pred_region
      %27 = dma.done [#allocation4], 2048
    $region13: #{slpnet_forward.1} parent=1 // pred_fallthru
      _
    %p28 = scmp.eq.s32.totalorder 0, 0
    // Predicated region
    $region14: #{slpnet_forward.1} parent=1 // pred_check
      %p29 = pneg %p28
    $region15: #{slpnet_forward.1} parent=1 // pred_check_branch
      %31 = sbr.rel (%p29) target = $region17
    $region16: #{slpnet_forward.1} parent=1 // pred_region
      %32 = vst [vmem:[#allocation2] sm:$0xff] 0.0
    $region17: #{slpnet_forward.1} parent=1 // pred_fallthru
      _
    %v33 = vld [vmem:[#allocation2] sm:$0xff]
    %v34 = vld [vmem:[%s0] sm:$0xff]
    %v35 = vld [vmem:[#allocation3] sm:$0xff]
    %v36 = vld [vmem:[#allocation3 + $0x8] sm:$0xff]
    %v37 = vld [vmem:[#allocation3 + $0x10] sm:$0xff]
    %v38 = vld [vmem:[#allocation3 + $0x18] sm:$0xff]
    %v39 = vld [vmem:[#allocation3 + $0x20] sm:$0xff]
    %v40 = vld [vmem:[#allocation3 + $0x28] sm:$0xff]
    %v41 = vld [vmem:[#allocation3 + $0x30] sm:$0xff]
    %v42 = vld [vmem:[#allocation3 + $0x38] sm:$0xff]
    %v43 = vld [vmem:[#allocation3 + $0x40] sm:$0xff]
    %v44 = vld [vmem:[#allocation3 + $0x48] sm:$0xff]
    %v45 = vld [vmem:[#allocation3 + $0x50] sm:$0xff]
    %v46 = vld [vmem:[#allocation3 + $0x58] sm:$0xff]
    %v47 = vld [vmem:[#allocation3 + $0x60] sm:$0xff]
    %v48 = vld [vmem:[#allocation3 + $0x68] sm:$0xff]
    %v49 = vld [vmem:[#allocation3 + $0x70] sm:$0xff]
    %v50 = vld [vmem:[#allocation3 + $0x78] sm:$0xff]
    %51 = vmatpush.msra.mxu0 %v50
    %52 = vmatpush.msra.mxu0 %v49
    %53 = vmatpush.msra.mxu0 %v48
    %54 = vmatpush.msra.mxu0 %v47
    %55 = vmatpush.msra.mxu0 %v46
    %56 = vmatpush.msra.mxu0 %v45
    %57 = vmatpush.msra.mxu0 %v44
    %58 = vmatpush.msra.mxu0 %v43
    %59 = vmatpush.msra.mxu0 %v42
    %60 = vmatpush.msra.mxu0 %v41
    %61 = vmatpush.msra.mxu0 %v40
    %62 = vmatpush.msra.mxu0 %v39
    %63 = vmatpush.msra.mxu0 %v38
    %64 = vmatpush.msra.mxu0 %v37
    %65 = vmatpush.msra.mxu0 %v36
    %66 = vmatpush.msra.mxu0 %v35
    %67 = vmatmul.f32.gmra.mxu0 %v34
    %v68 = vpop.f32.mrf.mxu0
    %v69 = vadd.f32 0.0, %v68
    %70 = vdwg.mxu0
    %v71 = vadd.f32 %v33, %v69
    %72 = vst [vmem:[#allocation2] sm:$0xff] %v71
    // Predicated region
    $region18: #{slpnet_forward.1} parent=1 // pred_check
      %p73 = pneg %p28
    $region19: #{slpnet_forward.1} parent=1 // pred_check_branch
      %75 = sbr.rel (%p73) target = $region21
    $region20: #{slpnet_forward.1} parent=1 // pred_region
      %v76 = vld [vmem:[#allocation2] sm:$0xff]
      %77 = vst [vmem:[#allocation6] sm:$0xff] %v76
    $region21: #{slpnet_forward.1} parent=1 // pred_fallthru
      _
    // Predicated region
    $region22: #{slpnet_forward.1} parent=1 // pred_check
      _
    $region23: #{slpnet_forward.1} parent=1 // pred_check_branch
      %79 = sbr.rel (0) target = $region25
    $region24: #{slpnet_forward.1} parent=1 // pred_region
      %81 = vsyncadd [#allocation5], 0
      %s83 = sshll.u32 [#allocation6], 4
      %s84 = int_to_ptr.vmem [resolvable:$true] %s83
      %s85 = sshll.u32 %s2, 4
      %s86 = int_to_ptr.hbm [resolvable:$true] %s85
      %88 = dma.vmem_to_hbm [thread:$0]  %s84, 128, %s86, [#allocation5]
    $region25: #{slpnet_forward.1} parent=1 // pred_fallthru
      _
    // Predicated region
    $region26: #{slpnet_forward.1} parent=1 // pred_check
      _
    $region27: #{slpnet_forward.1} parent=1 // pred_check_branch
      %90 = sbr.rel (0) target = $region29
    $region28: #{slpnet_forward.1} parent=1 // pred_region
      %92 = dma.done [#allocation5], 128
    $region29: #{slpnet_forward.1} parent=1 // pred_fallthru
      _
    %93 = vsyncpa [#allocation4], 1
    %94 = vsyncpa [#allocation5], 1

</llo_original>
